<compile_context>
chip_gen: v5e
topology: v5e:2x2
jax: 0.10.0
libtpu: 0.0.40
codegen_flags: <defaults>
</compile_context>

<pallas_src>
import jax
import jax.numpy as jnp
import numpy as np
from jax import lax
from jax.experimental import pallas as pl
from jax.experimental.pallas import tpu as pltpu

_BIG = 1e30  # large FINITE sentinel (relu kills it); never use +/-inf here


def _pick_tb(B):
    # Row tile: 256 fills the 256-wide MXU (v6e/v7x) when it still leaves >=2 grid
    # steps for megacore; otherwise 128; otherwise one tile covering all rows.
    if B % 256 == 0 and B >= 512:
        return 256
    if B % 128 == 0:
        return 128
    return B


def _pick_qc(B, TB):
    # Largest q-chunk whose (QC, TB) f32 loop carry fits in ~8 vregs and divides B.
    for c in (64, 32, 16, 8):
        if B % c == 0 and c * TB <= 8192:
            return c
    return B


def _pick_vmem_limit_bytes():
    try:
        cap = int(pltpu.get_tpu_info().vmem_capacity_bytes)
    except Exception:
        cap = 64 * 1024 * 1024  # conservative (v7x-sized) fallback
    return int(min(cap * 3 // 4, 96 * 1024 * 1024))


def _make_hinge_kernel(B, TB, QC):
    NC = B // QC
    single_tile = (TB == B)

    def kernel(ids_col_ref, ids_row_ref, inv_col_ref, inv_row_ref, feats_ref,
               out_ref, ct_ref, a_ref):
        t = pl.program_id(0)
        i0 = t * TB  # global offset of this row tile

        ids_q = ids_col_ref[...]            # (B, 1)   ids[q] along sublanes
        ids_i = ids_row_ref[...]            # (1, TB)  ids[i] along lanes
        inv_q = inv_col_ref[...]            # (B, 1)   1/||feats[q]||
        inv_i = inv_row_ref[...]            # (1, TB)  1/||feats[i0+i]||

        f_all = feats_ref[...]              # (B, F) native dtype (resident)
        if single_tile:
            f_tile = f_all
        else:
            f_tile = feats_ref[pl.ds(pl.multiple_of(i0, TB), TB), :]   # (TB, F)

        # Gram on the MXU in the input dtype, f32 accumulation; cosine post-scaled
        # by the precomputed inverse norms (divide-after-matmul, like the reference).
        g = lax.dot_general(f_all, f_tile, (((1,), (1,)), ((), ())),
                            preferred_element_type=jnp.float32)        # (B, TB)
        ct = g * inv_q * inv_i              # ct[q, i] = cos(feats[q], feats[i0 + i])

        # Masks in the transposed frame (symmetric in (q, i)).
        prow = lax.broadcasted_iota(jnp.int32, (B, TB), 0)              # partner index
        icol = lax.broadcasted_iota(jnp.int32, (B, TB), 1) + i0         # global row index
        not_diag = prow != icol
        same = ids_q == ids_i                                           # (B, TB)
        simT = jnp.logical_and(same, not_diag)
        difT = jnp.logical_and(jnp.logical_not(same), not_diag)

        sim_num = jnp.sum(simT.astype(jnp.float32), axis=0, keepdims=True)  # (1, TB)
        dif_num = jnp.sum(difT.astype(jnp.float32), axis=0, keepdims=True)  # (1, TB)

        # Fold masks into the scratch operands:
        #   ct_ref[p, i] = C[i, p] where sim, else +BIG  (relu(a - BIG) == 0)
        #   a_ref[q, i]  = marg[i, q] + C[i, q] where dif, else -BIG
        a_t = 0.15 * jnp.abs(ids_q - ids_i) + ct
        ct_ref[...] = jnp.where(simT, ct, _BIG)
        a_ref[...] = jnp.where(difT, a_t, -_BIG)

        # acc_row[i] = sum_q sum_p relu(a[q,i] - ct[p,i]) with both masks pre-folded.
        def make_p_body(a_chunk):
            def p_body(p, t_acc):
                c_row = ct_ref[pl.ds(p, 1), :]          # (1, TB): masked C[i, p]
                return t_acc + jnp.maximum(a_chunk - c_row, 0.0)
            return p_body

        if NC == 1:
            a_chunk = a_ref[...]                        # (B, TB)
            t_acc = lax.fori_loop(0, B, make_p_body(a_chunk),
                                  jnp.zeros((B, TB), jnp.float32), unroll=8)
            acc_row = jnp.sum(t_acc, axis=0, keepdims=True)
        else:
            def chunk_body(c, acc_row):
                qs = pl.multiple_of(c * QC, QC)
                a_chunk = a_ref[pl.ds(qs, QC), :]       # (QC, TB), register-resident carry
                t_acc = lax.fori_loop(0, B, make_p_body(a_chunk),
                                      jnp.zeros((QC, TB), jnp.float32), unroll=8)
                return acc_row + jnp.sum(t_acc, axis=0, keepdims=True)

            acc_row = lax.fori_loop(0, NC, chunk_body,
                                    jnp.zeros((1, TB), jnp.float32))

        # Per-row mean over (sim, dif) pairs; rows without both kinds of partner skipped.
        valid = jnp.logical_and(sim_num > 0.0, dif_num > 0.0)
        denom = jnp.where(valid, sim_num * dif_num, 1.0)
        loss_row = jnp.where(valid, acc_row / denom, 0.0)               # (1, TB)

        tile_sum = jnp.sum(loss_row)
        tile_cnt = jnp.sum(valid.astype(jnp.float32))

        # Lane-dense (1, 8, 128) partial slab: sublane 0 = sum, sublane 1 = valid count.
        rows = lax.broadcasted_iota(jnp.int32, (1, 8, 128), 1)
        out_ref[...] = jnp.where(rows == 0, tile_sum,
                                 jnp.where(rows == 1, tile_cnt, 0.0))

    return kernel


def hinge_loss(ids, feats, margin=0.1):
    # NOTE: `margin` is unused — the reference forward overwrites it with 0.15*|id diff|.
    B, F = feats.shape
    TB = _pick_tb(B)
    G = B // TB
    QC = _pick_qc(B, TB)

    ids_f = jnp.asarray(ids, jnp.float32).reshape(B)
    ids_col = ids_f.reshape(B, 1)
    ids_row = ids_f.reshape(1, B)

    # Inverse norms computed once (tiny (B,1) vector), hoisted out of the per-tile body.
    # min(rsqrt(sq + 1e-8), 1e8) == 1 / max(sqrt(sq + 1e-8), 1e-8) from the reference.
    f32 = jnp.asarray(feats).astype(jnp.float32)
    sq = jnp.sum(f32 * f32, axis=1, keepdims=True)                     # (B, 1)
    inv = jnp.minimum(lax.rsqrt(sq + 1e-8), 1e8)                       # (B, 1) f32
    inv_col = inv
    inv_row = inv.reshape(1, B)

    kernel = _make_hinge_kernel(B, TB, QC)
    partial = pl.pallas_call(
        kernel,
        out_shape=jax.ShapeDtypeStruct((G, 8, 128), jnp.float32),
        grid=(G,),
        in_specs=[
            pl.BlockSpec((B, 1), lambda t: (0, 0)),     # ids, column orientation (resident)
            pl.BlockSpec((1, TB), lambda t: (0, t)),    # ids, row orientation (tiled)
            pl.BlockSpec((B, 1), lambda t: (0, 0)),     # 1/norm, column (resident)
            pl.BlockSpec((1, TB), lambda t: (0, t)),    # 1/norm, row (tiled)
            pl.BlockSpec((B, F), lambda t: (0, 0)),     # feats, full (resident; tile sliced in-kernel)
        ],
        out_specs=pl.BlockSpec((1, 8, 128), lambda t: (t, 0, 0)),
        scratch_shapes=[
            pltpu.VMEM((B, TB), jnp.float32),           # sim-folded C^T for this tile
            pltpu.VMEM((B, TB), jnp.float32),           # dif-folded (marg + C)^T for this tile
        ],
        compiler_params=pltpu.CompilerParams(
            dimension_semantics=("parallel",),
            vmem_limit_bytes=_pick_vmem_limit_bytes(),
        ),
    )(ids_col, ids_row, inv_col, inv_row, feats)

    total = jnp.sum(partial[:, 0, 0])
    count = jnp.sum(partial[:, 1, 0])
    return total / jnp.maximum(count, 1.0)


def hinge_loss_ref(ids, feats):
    # Direct (loopy) translation of the PyTorch forward, for validation only.
    ids = np.asarray(ids, dtype=np.float64)
    feats = np.asarray(feats, dtype=np.float64)
    B, _ = feats.shape
    norms = np.maximum(np.sqrt(np.sum(feats ** 2, axis=1) + 1e-8), 1e-8)
    C = (feats @ feats.T) / (norms[:, None] * norms[None, :])
    loss = 0.0
    loss_num = 0
    for i in range(B):
        sim_idx = [j for j in range(B) if j != i and ids[j] == ids[i]]
        dif_idx = [j for j in range(B) if j != i and ids[j] != ids[i]]
        if not sim_idx or not dif_idx:
            continue
        vals = []
        for p in sim_idx:
            for q in dif_idx:
                m = 0.15 * abs(ids[i] - ids[q])
                vals.append(max(0.0, m - C[i, p] + C[i, q]))
        loss += sum(vals) / len(vals)
        loss_num += 1
    if loss_num == 0:
        loss_num = 1
    return loss / loss_num


if __name__ == "__main__":
    key = jax.random.PRNGKey(0)
    B, F = 8, 32
    feats = jax.random.normal(key, (B, F), dtype=jnp.float32)
    # integer-valued class ids (as float32), with both same-id and different-id pairs
    ids = jnp.array([0, 0, 1, 1, 2, 2, 0, 1], dtype=jnp.float32)

    out = hinge_loss(ids, feats)
    out = jax.block_until_ready(out)

    ref = hinge_loss_ref(np.array(ids), np.array(feats))
    assert abs(float(out) - float(ref)) < 1e-4, (float(out), float(ref))
    print("KERNEL_OK")
</pallas_src>

<mosaic_0001>
module attributes {stable_mosaic.version = 11 : i64} {
  func.func @kernel(%arg0: i32, %arg1: memref<8x1xf32, #tpu.memory_space<vmem>>, %arg2: memref<1x8xf32, #tpu.memory_space<vmem>>, %arg3: memref<8x1xf32, #tpu.memory_space<vmem>>, %arg4: memref<1x8xf32, #tpu.memory_space<vmem>>, %arg5: memref<8x32xf32, #tpu.memory_space<vmem>>, %arg6: memref<1x8x128xf32, #tpu.memory_space<vmem>>, %arg7: memref<8x8xf32, #tpu.memory_space<vmem>>, %arg8: memref<8x8xf32, #tpu.memory_space<vmem>>) attributes {dimension_semantics = [#tpu.dimension_semantics<parallel>], iteration_bounds = array<i64: 1>, scalar_prefetch = 0 : i64, scratch_operands = 2 : i64, tpu.core_type = #tpu.core_type<tc>, window_params = [{pipeline_mode = #tpu.pipeline_mode<synchronous>, transform_indices = @transform_0, window_bounds = array<i64: 8, 1>}, {transform_indices = @transform_1, window_bounds = array<i64: 1, 8>}, {pipeline_mode = #tpu.pipeline_mode<synchronous>, transform_indices = @transform_2, window_bounds = array<i64: 8, 1>}, {transform_indices = @transform_3, window_bounds = array<i64: 1, 8>}, {pipeline_mode = #tpu.pipeline_mode<synchronous>, transform_indices = @transform_4, window_bounds = array<i64: 8, 32>}, {transform_indices = @transform_5, window_bounds = array<i64: 1, 8, 128>}]} {
    %c8_i32 = arith.constant 8 : i32
    %0 = arith.muli %arg0, %c8_i32 : i32
    %c0 = arith.constant 0 : index
    %c0_0 = arith.constant 0 : index
    %1 = vector.load %arg1[%c0, %c0_0] : memref<8x1xf32, #tpu.memory_space<vmem>>, vector<8x1xf32>
    %c0_1 = arith.constant 0 : index
    %c0_2 = arith.constant 0 : index
    %2 = vector.load %arg2[%c0_1, %c0_2] : memref<1x8xf32, #tpu.memory_space<vmem>>, vector<1x8xf32>
    %c0_3 = arith.constant 0 : index
    %c0_4 = arith.constant 0 : index
    %3 = vector.load %arg3[%c0_3, %c0_4] : memref<8x1xf32, #tpu.memory_space<vmem>>, vector<8x1xf32>
    %c0_5 = arith.constant 0 : index
    %c0_6 = arith.constant 0 : index
    %4 = vector.load %arg4[%c0_5, %c0_6] : memref<1x8xf32, #tpu.memory_space<vmem>>, vector<1x8xf32>
    %c0_7 = arith.constant 0 : index
    %c0_8 = arith.constant 0 : index
    %5 = vector.load %arg5[%c0_7, %c0_8] : memref<8x32xf32, #tpu.memory_space<vmem>>, vector<8x32xf32>
    %cst = arith.constant dense<0.000000e+00> : vector<8x8xf32>
    %6 = tpu.matmul %5, %5, %cst {dimension_numbers = #tpu.dot_dimension_numbers<[1], [1], [0], [0], [0, 0, 1, 0], [], []>} : vector<8x32xf32>, vector<8x32xf32>, vector<8x8xf32> -> vector<8x8xf32>
    %7 = vector.broadcast %3 : vector<8x1xf32> to vector<8x8xf32>
    %8 = arith.mulf %6, %7 : vector<8x8xf32>
    %9 = vector.broadcast %4 : vector<1x8xf32> to vector<8x8xf32>
    %10 = arith.mulf %8, %9 : vector<8x8xf32>
    %11 = tpu.iota {dimensions = array<i32: 0>} : vector<8x8xi32>
    %12 = tpu.iota {dimensions = array<i32: 1>} : vector<8x8xi32>
    %13 = vector.broadcast %0 : i32 to vector<8x8xi32>
    %14 = arith.addi %12, %13 : vector<8x8xi32>
    %15 = arith.cmpi ne, %11, %14 : vector<8x8xi32>
    %16 = vector.broadcast %1 : vector<8x1xf32> to vector<8x8xf32>
    %17 = vector.broadcast %2 : vector<1x8xf32> to vector<8x8xf32>
    %18 = arith.cmpf oeq, %16, %17 : vector<8x8xf32>
    %19 = arith.andi %18, %15 : vector<8x8xi1>
    %cst_9 = arith.constant dense<true> : vector<8x8xi1>
    %20 = arith.xori %18, %cst_9 : vector<8x8xi1>
    %21 = arith.andi %20, %15 : vector<8x8xi1>
    %22 = arith.extui %19 : vector<8x8xi1> to vector<8x8xi32>
    %23 = arith.sitofp %22 : vector<8x8xi32> to vector<8x8xf32>
    %cst_10 = arith.constant dense<0.000000e+00> : vector<8xf32>
    %24 = vector.multi_reduction <add>, %23, %cst_10 [0] : vector<8x8xf32> to vector<8xf32>
    %25 = vector.shape_cast %24 : vector<8xf32> to vector<1x8xf32>
    %26 = arith.extui %21 : vector<8x8xi1> to vector<8x8xi32>
    %27 = arith.sitofp %26 : vector<8x8xi32> to vector<8x8xf32>
    %cst_11 = arith.constant dense<0.000000e+00> : vector<8xf32>
    %28 = vector.multi_reduction <add>, %27, %cst_11 [0] : vector<8x8xf32> to vector<8xf32>
    %29 = vector.shape_cast %28 : vector<8xf32> to vector<1x8xf32>
    %30 = vector.broadcast %1 : vector<8x1xf32> to vector<8x8xf32>
    %31 = vector.broadcast %2 : vector<1x8xf32> to vector<8x8xf32>
    %32 = arith.subf %30, %31 : vector<8x8xf32>
    %33 = math.absf %32 : vector<8x8xf32>
    %cst_12 = arith.constant 1.500000e-01 : f32
    %34 = vector.broadcast %cst_12 : f32 to vector<8x8xf32>
    %35 = arith.mulf %34, %33 : vector<8x8xf32>
    %36 = arith.addf %35, %10 : vector<8x8xf32>
    %cst_13 = arith.constant 1.000000e+30 : f32
    %37 = vector.broadcast %cst_13 : f32 to vector<8x8xf32>
    %38 = arith.select %19, %10, %37 : vector<8x8xi1>, vector<8x8xf32>
    %c0_14 = arith.constant 0 : index
    %c0_15 = arith.constant 0 : index
    %39 = vector.load %arg7[%c0_14, %c0_15] : memref<8x8xf32, #tpu.memory_space<vmem>>, vector<8x8xf32>
    tpu.vector_store %arg7[%c0_14, %c0_15], %38 {strides = array<i32>} : memref<8x8xf32, #tpu.memory_space<vmem>>, vector<8x8xf32>,
    %cst_16 = arith.constant -1.000000e+30 : f32
    %40 = vector.broadcast %cst_16 : f32 to vector<8x8xf32>
    %41 = arith.select %21, %36, %40 : vector<8x8xi1>, vector<8x8xf32>
    %c0_17 = arith.constant 0 : index
    %c0_18 = arith.constant 0 : index
    %42 = vector.load %arg8[%c0_17, %c0_18] : memref<8x8xf32, #tpu.memory_space<vmem>>, vector<8x8xf32>
    tpu.vector_store %arg8[%c0_17, %c0_18], %41 {strides = array<i32>} : memref<8x8xf32, #tpu.memory_space<vmem>>, vector<8x8xf32>,
    %c0_19 = arith.constant 0 : index
    %c0_20 = arith.constant 0 : index
    %43 = vector.load %arg8[%c0_19, %c0_20] : memref<8x8xf32, #tpu.memory_space<vmem>>, vector<8x8xf32>
    %cst_21 = arith.constant 0.000000e+00 : f32
    %44 = vector.broadcast %cst_21 : f32 to vector<8x8xf32>
    %c0_i32 = arith.constant 0 : i32
    %45 = arith.index_cast %c0_i32 : i32 to index
    %c0_22 = arith.constant 0 : index
    %46 = vector.load %arg7[%45, %c0_22] : memref<8x8xf32, #tpu.memory_space<vmem>>, vector<1x8xf32>
    %47 = vector.broadcast %46 : vector<1x8xf32> to vector<8x8xf32>
    %48 = arith.subf %43, %47 : vector<8x8xf32>
    %cst_23 = arith.constant 0.000000e+00 : f32
    %49 = vector.broadcast %cst_23 : f32 to vector<8x8xf32>
    %50 = arith.maximumf %48, %49 : vector<8x8xf32>
    %51 = arith.addf %44, %50 : vector<8x8xf32>
    %c1_i32 = arith.constant 1 : i32
    %52 = arith.index_cast %c1_i32 : i32 to index
    %c0_24 = arith.constant 0 : index
    %53 = vector.load %arg7[%52, %c0_24] : memref<8x8xf32, #tpu.memory_space<vmem>>, vector<1x8xf32>
    %54 = vector.broadcast %53 : vector<1x8xf32> to vector<8x8xf32>
    %55 = arith.subf %43, %54 : vector<8x8xf32>
    %cst_25 = arith.constant 0.000000e+00 : f32
    %56 = vector.broadcast %cst_25 : f32 to vector<8x8xf32>
    %57 = arith.maximumf %55, %56 : vector<8x8xf32>
    %58 = arith.addf %51, %57 : vector<8x8xf32>
    %c2_i32 = arith.constant 2 : i32
    %59 = arith.index_cast %c2_i32 : i32 to index
    %c0_26 = arith.constant 0 : index
    %60 = vector.load %arg7[%59, %c0_26] : memref<8x8xf32, #tpu.memory_space<vmem>>, vector<1x8xf32>
    %61 = vector.broadcast %60 : vector<1x8xf32> to vector<8x8xf32>
    %62 = arith.subf %43, %61 : vector<8x8xf32>
    %cst_27 = arith.constant 0.000000e+00 : f32
    %63 = vector.broadcast %cst_27 : f32 to vector<8x8xf32>
    %64 = arith.maximumf %62, %63 : vector<8x8xf32>
    %65 = arith.addf %58, %64 : vector<8x8xf32>
    %c3_i32 = arith.constant 3 : i32
    %66 = arith.index_cast %c3_i32 : i32 to index
    %c0_28 = arith.constant 0 : index
    %67 = vector.load %arg7[%66, %c0_28] : memref<8x8xf32, #tpu.memory_space<vmem>>, vector<1x8xf32>
    %68 = vector.broadcast %67 : vector<1x8xf32> to vector<8x8xf32>
    %69 = arith.subf %43, %68 : vector<8x8xf32>
    %cst_29 = arith.constant 0.000000e+00 : f32
    %70 = vector.broadcast %cst_29 : f32 to vector<8x8xf32>
    %71 = arith.maximumf %69, %70 : vector<8x8xf32>
    %72 = arith.addf %65, %71 : vector<8x8xf32>
    %c4_i32 = arith.constant 4 : i32
    %73 = arith.index_cast %c4_i32 : i32 to index
    %c0_30 = arith.constant 0 : index
    %74 = vector.load %arg7[%73, %c0_30] : memref<8x8xf32, #tpu.memory_space<vmem>>, vector<1x8xf32>
    %75 = vector.broadcast %74 : vector<1x8xf32> to vector<8x8xf32>
    %76 = arith.subf %43, %75 : vector<8x8xf32>
    %cst_31 = arith.constant 0.000000e+00 : f32
    %77 = vector.broadcast %cst_31 : f32 to vector<8x8xf32>
    %78 = arith.maximumf %76, %77 : vector<8x8xf32>
    %79 = arith.addf %72, %78 : vector<8x8xf32>
    %c5_i32 = arith.constant 5 : i32
    %80 = arith.index_cast %c5_i32 : i32 to index
    %c0_32 = arith.constant 0 : index
    %81 = vector.load %arg7[%80, %c0_32] : memref<8x8xf32, #tpu.memory_space<vmem>>, vector<1x8xf32>
    %82 = vector.broadcast %81 : vector<1x8xf32> to vector<8x8xf32>
    %83 = arith.subf %43, %82 : vector<8x8xf32>
    %cst_33 = arith.constant 0.000000e+00 : f32
    %84 = vector.broadcast %cst_33 : f32 to vector<8x8xf32>
    %85 = arith.maximumf %83, %84 : vector<8x8xf32>
    %86 = arith.addf %79, %85 : vector<8x8xf32>
    %c6_i32 = arith.constant 6 : i32
    %87 = arith.index_cast %c6_i32 : i32 to index
    %c0_34 = arith.constant 0 : index
    %88 = vector.load %arg7[%87, %c0_34] : memref<8x8xf32, #tpu.memory_space<vmem>>, vector<1x8xf32>
    %89 = vector.broadcast %88 : vector<1x8xf32> to vector<8x8xf32>
    %90 = arith.subf %43, %89 : vector<8x8xf32>
    %cst_35 = arith.constant 0.000000e+00 : f32
    %91 = vector.broadcast %cst_35 : f32 to vector<8x8xf32>
    %92 = arith.maximumf %90, %91 : vector<8x8xf32>
    %93 = arith.addf %86, %92 : vector<8x8xf32>
    %c7_i32 = arith.constant 7 : i32
    %94 = arith.index_cast %c7_i32 : i32 to index
    %c0_36 = arith.constant 0 : index
    %95 = vector.load %arg7[%94, %c0_36] : memref<8x8xf32, #tpu.memory_space<vmem>>, vector<1x8xf32>
    %96 = vector.broadcast %95 : vector<1x8xf32> to vector<8x8xf32>
    %97 = arith.subf %43, %96 : vector<8x8xf32>
    %cst_37 = arith.constant 0.000000e+00 : f32
    %98 = vector.broadcast %cst_37 : f32 to vector<8x8xf32>
    %99 = arith.maximumf %97, %98 : vector<8x8xf32>
    %100 = arith.addf %93, %99 : vector<8x8xf32>
    %c8_i32_38 = arith.constant 8 : i32
    %cst_39 = arith.constant dense<0.000000e+00> : vector<8xf32>
    %101 = vector.multi_reduction <add>, %100, %cst_39 [0] : vector<8x8xf32> to vector<8xf32>
    %102 = vector.shape_cast %101 : vector<8xf32> to vector<1x8xf32>
    %cst_40 = arith.constant 0.000000e+00 : f32
    %103 = vector.broadcast %cst_40 : f32 to vector<1x8xf32>
    %104 = arith.cmpf ogt, %25, %103 : vector<1x8xf32>
    %cst_41 = arith.constant 0.000000e+00 : f32
    %105 = vector.broadcast %cst_41 : f32 to vector<1x8xf32>
    %106 = arith.cmpf ogt, %29, %105 : vector<1x8xf32>
    %107 = arith.andi %104, %106 : vector<1x8xi1>
    %108 = arith.mulf %25, %29 : vector<1x8xf32>
    %cst_42 = arith.constant 1.000000e+00 : f32
    %109 = vector.broadcast %cst_42 : f32 to vector<1x8xf32>
    %110 = arith.select %107, %108, %109 : vector<1x8xi1>, vector<1x8xf32>
    %111 = arith.divf %102, %110 : vector<1x8xf32>
    %cst_43 = arith.constant 0.000000e+00 : f32
    %112 = vector.broadcast %cst_43 : f32 to vector<1x8xf32>
    %113 = arith.select %107, %111, %112 : vector<1x8xi1>, vector<1x8xf32>
    %114 = vector.shape_cast %113 : vector<1x8xf32> to vector<1x1x8xf32>
    %cst_44 = arith.constant dense<0.000000e+00> : vector<1xf32>
    %115 = vector.multi_reduction <add>, %114, %cst_44 [1, 2] : vector<1x1x8xf32> to vector<1xf32>
    %116 = vector.shape_cast %115 : vector<1xf32> to vector<1x1x1xf32>
    %117 = vector.extract %116[0, 0, 0] : f32 from vector<1x1x1xf32>
    %118 = arith.extui %107 : vector<1x8xi1> to vector<1x8xi32>
    %119 = arith.sitofp %118 : vector<1x8xi32> to vector<1x8xf32>
    %120 = vector.shape_cast %119 : vector<1x8xf32> to vector<1x1x8xf32>
    %cst_45 = arith.constant dense<0.000000e+00> : vector<1xf32>
    %121 = vector.multi_reduction <add>, %120, %cst_45 [1, 2] : vector<1x1x8xf32> to vector<1xf32>
    %122 = vector.shape_cast %121 : vector<1xf32> to vector<1x1x1xf32>
    %123 = vector.extract %122[0, 0, 0] : f32 from vector<1x1x1xf32>
    %124 = tpu.iota {dimensions = array<i32: 1>} : vector<1x8x128xi32>
    %c0_i32_46 = arith.constant 0 : i32
    %125 = vector.broadcast %c0_i32_46 : i32 to vector<1x8x128xi32>
    %126 = arith.cmpi eq, %124, %125 : vector<1x8x128xi32>
    %c1_i32_47 = arith.constant 1 : i32
    %127 = vector.broadcast %c1_i32_47 : i32 to vector<1x8x128xi32>
    %128 = arith.cmpi eq, %124, %127 : vector<1x8x128xi32>
    %cst_48 = arith.constant 0.000000e+00 : f32
    %129 = vector.broadcast %123 : f32 to vector<1x8x128xf32>
    %130 = vector.broadcast %cst_48 : f32 to vector<1x8x128xf32>
    %131 = arith.select %128, %129, %130 : vector<1x8x128xi1>, vector<1x8x128xf32>
    %132 = vector.broadcast %117 : f32 to vector<1x8x128xf32>
    %133 = arith.select %126, %132, %131 : vector<1x8x128xi1>, vector<1x8x128xf32>
    %c0_49 = arith.constant 0 : index
    %c0_50 = arith.constant 0 : index
    %c0_51 = arith.constant 0 : index
    %134 = vector.load %arg6[%c0_49, %c0_50, %c0_51] : memref<1x8x128xf32, #tpu.memory_space<vmem>>, vector<1x8x128xf32>
    tpu.vector_store %arg6[%c0_49, %c0_50, %c0_51], %133 {strides = array<i32>} : memref<1x8x128xf32, #tpu.memory_space<vmem>>, vector<1x8x128xf32>,
    return
  }
  func.func @transform_0(%arg0: i32) -> (i32, i32) {
    %c0_i32 = arith.constant 0 : i32
    %c0_i32_0 = arith.constant 0 : i32
    %c0_i32_1 = arith.constant 0 : i32
    return %c0_i32, %c0_i32_0 : i32, i32
  }
  func.func @transform_1(%arg0: i32) -> (i32, i32) {
    %c0_i32 = arith.constant 0 : i32
    %c0_i32_0 = arith.constant 0 : i32
    return %c0_i32, %arg0 : i32, i32
  }
  func.func @transform_2(%arg0: i32) -> (i32, i32) {
    %c0_i32 = arith.constant 0 : i32
    %c0_i32_0 = arith.constant 0 : i32
    %c0_i32_1 = arith.constant 0 : i32
    return %c0_i32, %c0_i32_0 : i32, i32
  }
  func.func @transform_3(%arg0: i32) -> (i32, i32) {
    %c0_i32 = arith.constant 0 : i32
    %c0_i32_0 = arith.constant 0 : i32
    return %c0_i32, %arg0 : i32, i32
  }
  func.func @transform_4(%arg0: i32) -> (i32, i32) {
    %c0_i32 = arith.constant 0 : i32
    %c0_i32_0 = arith.constant 0 : i32
    %c0_i32_1 = arith.constant 0 : i32
    return %c0_i32, %c0_i32_0 : i32, i32
  }
  func.func @transform_5(%arg0: i32) -> (i32, i32, i32) {
    %c0_i32 = arith.constant 0 : i32
    %c0_i32_0 = arith.constant 0 : i32
    %c0_i32_1 = arith.constant 0 : i32
    return %arg0, %c0_i32, %c0_i32_0 : i32, i32, i32
  }
}

</mosaic_0001>

<llo_original>
// kernel: tpu_custom_call.1
$region0: #{tpu_custom_call.1}
  #allocation0 [shape = 'u32[]', space=smem, size = 0x4, offset = 0x4, fixed_abs, tag = 'smem constant byte address 0x4 - core index']
  #allocation1 [shape = 'u32[72,128]{1,0:T(1,128)}', space=vmem, size = 0x9000, scoped, tag = 'internal scratch']
  #allocation2 [shape = 'f32[8,8]{1,0:T(8,128)}', space=vmem, size = 0x1000, scoped, tag = 'scratch operand']
  #allocation3 [shape = 'f32[8,8]{1,0:T(8,128)}', space=vmem, size = 0x1000, scoped, tag = 'scratch operand']
  %s0 = inlined_call_operand.vmem [shape: f32[8,1], index: 0, kind: input, shape index: {}]
  %s1 = inlined_call_operand.vmem [shape: f32[1,8], index: 1, kind: input, shape index: {}]
  %s2 = inlined_call_operand.vmem [shape: f32[8,1], index: 2, kind: input, shape index: {}]
  %s3 = inlined_call_operand.vmem [shape: f32[1,8], index: 3, kind: input, shape index: {}]
  %s4 = inlined_call_operand.vmem [shape: f32[8,32], index: 4, kind: input, shape index: {}]
  %s5 = inlined_call_operand.hbm [shape: f32[1,8,128], index: 5, kind: output, shape index: {}]
  %s6 = sld [smem:[#allocation0]]
  $region30: #{tpu_custom_call.1} parent=0
    _
  %s8 = ssub.s32 1, %s6
  %s9 = scalar_select 0, %s8, %s6
  $region1: #{tpu_custom_call.1} parent=0
    #allocation4 [shape = 'u8[4096]{0}', space=vmem, size = 0x1000, scoped, tag = 'output window, operand 0, single buffered']
    #allocation5 [shape = 's32[1]{0}', space=sflag, size = 0x4, scoped, tag = 'scoped memory for tpu_custom_call.1']
    %10 = vsyncpa [#allocation5], 0
    // Predicated region
    $region2: #{tpu_custom_call.1} parent=1 // pred_check
      _
    $region3: #{tpu_custom_call.1} parent=1 // pred_check_branch
      %12 = sbr.rel (0) target = $region5
    $region4: #{tpu_custom_call.1} parent=1 // pred_region
      _
    $region5: #{tpu_custom_call.1} parent=1 // pred_fallthru
      _
    // Predicated region
    $region6: #{tpu_custom_call.1} parent=1 // pred_check
      _
    $region7: #{tpu_custom_call.1} parent=1 // pred_check_branch
      %14 = sbr.rel (0) target = $region9
    $region8: #{tpu_custom_call.1} parent=1 // pred_region
      _
    $region9: #{tpu_custom_call.1} parent=1 // pred_fallthru
      _
    // Predicated region
    $region10: #{tpu_custom_call.1} parent=1 // pred_check
      _
    $region11: #{tpu_custom_call.1} parent=1 // pred_check_branch
      %16 = sbr.rel (0) target = $region13
    $region12: #{tpu_custom_call.1} parent=1 // pred_region
      _
    $region13: #{tpu_custom_call.1} parent=1 // pred_fallthru
      _
    // Predicated region
    $region14: #{tpu_custom_call.1} parent=1 // pred_check
      _
    $region15: #{tpu_custom_call.1} parent=1 // pred_check_branch
      %18 = sbr.rel (0) target = $region17
    $region16: #{tpu_custom_call.1} parent=1 // pred_region
      _
    $region17: #{tpu_custom_call.1} parent=1 // pred_fallthru
      _
    // Predicated region
    $region18: #{tpu_custom_call.1} parent=1 // pred_check
      _
    $region19: #{tpu_custom_call.1} parent=1 // pred_check_branch
      %20 = sbr.rel (0) target = $region21
    $region20: #{tpu_custom_call.1} parent=1 // pred_region
      _
    $region21: #{tpu_custom_call.1} parent=1 // pred_fallthru
      _
    %s21 = smul.u32 0, 8
    %v22 = vld [vmem:[%s0] sm:$0xff]
    %v23 = vld [vmem:[%s1] sm:$0x1]
    %v24 = vld [vmem:[%s2] sm:$0xff]
    %v25 = vld [vmem:[%s3] sm:$0x1]
    %v26 = vld [vmem:[%s4] sm:$0xff]
    %vm27 = vcmask 261120
    %v29 = vsel %vm27, %v26, 0
    %31 = vmatpush.xpose.msra.mxu0 0.0
    %32 = vmatpush.xpose.msra.mxu0 0.0
    %33 = vmatpush.xpose.msra.mxu0 0.0
    %34 = vmatpush.xpose.msra.mxu0 0.0
    %35 = vmatpush.xpose.msra.mxu0 0.0
    %36 = vmatpush.xpose.msra.mxu0 0.0
    %37 = vmatpush.xpose.msra.mxu0 0.0
    %38 = vmatpush.xpose.msra.mxu0 0.0
    %39 = vmatpush.xpose.msra.mxu0 0.0
    %40 = vmatpush.xpose.msra.mxu0 0.0
    %41 = vmatpush.xpose.msra.mxu0 0.0
    %42 = vmatpush.xpose.msra.mxu0 0.0
    %43 = vmatpush.xpose.msra.mxu0 0.0
    %44 = vmatpush.xpose.msra.mxu0 0.0
    %45 = vmatpush.xpose.msra.mxu0 0.0
    %46 = vmatpush.xpose.msra.mxu0 %v29
    %47 = vmatmul.f32.gmra.mxu0 %v29
    %v48 = vpop.f32.mrf.mxu0
    %v49 = vadd.f32 0.0, %v48
    %50 = vdwg.mxu0
    %52 = vset.pattern.permute.xlu0 0
    %53 = vperm.xlu0 %52, %v24
    %v54 = vpop.permute.xlu0 %53
    %v56 = vmul.f32 %v49, %v54
    %v58 = vperm.slane %v25, 0
    %v60 = vmul.f32 %v56, %v58
    %v61 = vlaneseq
    %v62 = vshrl.u32 %v61, 7
    %v63 = vlaneseq
    %v64 = vand.u32 %v63, 127
    %v65 = vstv %s21
    %v66 = vadd.s32 %v64, %v65
    %vm67 = vcmp.ne.s32.totalorder %v62, %v66
    %69 = vset.pattern.permute.xlu0 0
    %70 = vperm.xlu0 %69, %v22
    %v71 = vpop.permute.xlu0 %70
    %v74 = vperm.slane %v23, 0
    %vm76 = vcmp.eq.f32.partialorder %v71, %v74
    %vm77 = vmand %vm76, %vm67
    %vm78 = vmxor %vm76, 1
    %vm79 = vmand %vm78, %vm67
    %v80 = vsel %vm77, 1, 0
    %v81 = vcvt.s32.f32 %v80
    %vm82 = vcmask 64512
    %v83 = vsel %vm82, %v81, 0.0
    %v84 = vrot.slane %v83, 4
    %v85 = vadd.f32 %v83, %v84
    %v86 = vrot.slane %v85, 2
    %v87 = vadd.f32 %v85, %v86
    %v88 = vrot.slane %v87, 1
    %v89 = vadd.f32 %v87, %v88
    %v90 = vsel %vm79, 1, 0
    %v91 = vcvt.s32.f32 %v90
    %v92 = vsel %vm82, %v91, 0.0
    %v93 = vrot.slane %v92, 4
    %v94 = vadd.f32 %v92, %v93
    %v95 = vrot.slane %v94, 2
    %v96 = vadd.f32 %v94, %v95
    %v97 = vrot.slane %v96, 1
    %v98 = vadd.f32 %v96, %v97
    %v99 = vsub.f32 %v71, %v74
    %v100 = vand.u32 2147483647, %v99
    %v101 = vmul.f32 %v100, 0.15
    %v102 = vadd.f32 %v101, %v60
    %v103 = vsel %vm77, %v60, 1e+30
    %104 = vst.msk [vmem:[#allocation2] sm:$0xff] %vm82, %v103
    %v105 = vsel %vm79, %v102, -1e+30
    %106 = vst.msk [vmem:[#allocation3] sm:$0xff] %vm82, %v105
    %v107 = vld [vmem:[#allocation3] sm:$0xff]
    %v108 = vld [vmem:[#allocation2] sm:$0x1]
    %v109 = vperm.slane %v108, 0
    %v110 = vsub.f32 %v107, %v109
    %v111 = vmax.f32 %v110, 0.0
    %v112 = vadd.f32 %v111, 0.0
    %v113 = vld [vmem:[#allocation2 + $0x1] sm:$0x1]
    %v114 = vperm.slane %v113, 0
    %v115 = vsub.f32 %v107, %v114
    %v116 = vmax.f32 %v115, 0.0
    %v117 = vadd.f32 %v112, %v116
    %v118 = vld [vmem:[#allocation2 + $0x2] sm:$0x1]
    %v119 = vperm.slane %v118, 0
    %v120 = vsub.f32 %v107, %v119
    %v121 = vmax.f32 %v120, 0.0
    %v122 = vadd.f32 %v117, %v121
    %v123 = vld [vmem:[#allocation2 + $0x3] sm:$0x1]
    %v124 = vperm.slane %v123, 0
    %v125 = vsub.f32 %v107, %v124
    %v126 = vmax.f32 %v125, 0.0
    %v127 = vadd.f32 %v122, %v126
    %v128 = vld [vmem:[#allocation2 + $0x4] sm:$0x1]
    %v129 = vperm.slane %v128, 0
    %v130 = vsub.f32 %v107, %v129
    %v131 = vmax.f32 %v130, 0.0
    %v132 = vadd.f32 %v127, %v131
    %v133 = vld [vmem:[#allocation2 + $0x5] sm:$0x1]
    %v134 = vperm.slane %v133, 0
    %v135 = vsub.f32 %v107, %v134
    %v136 = vmax.f32 %v135, 0.0
    %v137 = vadd.f32 %v132, %v136
    %v138 = vld [vmem:[#allocation2 + $0x6] sm:$0x1]
    %v139 = vperm.slane %v138, 0
    %v140 = vsub.f32 %v107, %v139
    %v141 = vmax.f32 %v140, 0.0
    %v142 = vadd.f32 %v137, %v141
    %v143 = vld [vmem:[#allocation2 + $0x7] sm:$0x1]
    %v144 = vperm.slane %v143, 0
    %v145 = vsub.f32 %v107, %v144
    %v146 = vmax.f32 %v145, 0.0
    %v147 = vadd.f32 %v142, %v146
    %v148 = vsel %vm82, %v147, 0.0
    %v149 = vrot.slane %v148, 4
    %v150 = vadd.f32 %v148, %v149
    %v151 = vrot.slane %v150, 2
    %v152 = vadd.f32 %v150, %v151
    %v153 = vrot.slane %v152, 1
    %v154 = vadd.f32 %v152, %v153
    %vm155 = vcmp.gt.f32.partialorder %v89, 0.0
    %vm156 = vcmp.gt.f32.partialorder %v98, 0.0
    %vm157 = vmand %vm155, %vm156
    %v158 = vmul.f32 %v89, %v98
    %v159 = vsel %vm157, %v158, 1.0
    %v160 = vrcp.pop %v159
    %v161 = vmul.f32 %v159, %v160
    %v162 = vsub.f32 1.0, %v161
    %v163 = vmul.f32 %v160, %v162
    %v164 = vadd.f32 %v160, %v163
    %vm165 = vweird.f32 %v159
    %vm166 = vweird.f32 %v160
    %vm167 = vmor %vm165, %vm166
    %v168 = vsel %vm167, %v160, %v164
    %v169 = vand.u32 2147483647, %v159
    %vm170 = vcmp.eq.f32.partialorder %v169, 8.507059e+37
    %v171 = vand.u32 %v159, 2147483648
    %v172 = vor.u32 1.1754944e-38, %v171
    %v173 = vsel %vm170, %v172, %v168
    %v174 = vmul.f32 %v154, %v173
    %v175 = vsel %vm157, %v174, 0.0
    %vm176 = vcmask 57344
    %v177 = vsel %vm176, %v175, 0.0
    %178 = vadd.xlane.f32.xlu0 %v177
    %v179 = vpop.xlane.xlu0 %178
    %v180 = vrot.slane %v179, 4
    %v181 = vadd.f32 %v179, %v180
    %v182 = vrot.slane %v181, 2
    %v183 = vadd.f32 %v181, %v182
    %v184 = vrot.slane %v183, 1
    %v185 = vadd.f32 %v183, %v184
    %s186 = vtos %v185
    %v187 = vsel %vm157, 1, 0
    %v188 = vcvt.s32.f32 %v187
    %v189 = vsel %vm176, %v188, 0.0
    %190 = vadd.xlane.f32.xlu0 %v189
    %v191 = vpop.xlane.xlu0 %190
    %v192 = vrot.slane %v191, 4
    %v193 = vadd.f32 %v191, %v192
    %v194 = vrot.slane %v193, 2
    %v195 = vadd.f32 %v193, %v194
    %v196 = vrot.slane %v195, 1
    %v197 = vadd.f32 %v195, %v196
    %s198 = vtos %v197
    %vm199 = vcmp.eq.s32.totalorder %v62, 0
    %vm200 = vcmp.eq.s32.totalorder %v62, 1
    %v201 = vstv %s198
    %v202 = vsel %vm200, %v201, 0.0
    %v203 = vstv %s186
    %v204 = vsel %vm199, %v203, %v202
    %205 = vst [vmem:[#allocation4] sm:$0xff] %v204
    // Predicated region
    $region22: #{tpu_custom_call.1} parent=1 // pred_check
      _
    $region23: #{tpu_custom_call.1} parent=1 // pred_check_branch
      %207 = sbr.rel (0) target = $region25
    $region24: #{tpu_custom_call.1} parent=1 // pred_region
      %209 = vsyncadd [#allocation5], 0
      %s211 = sshll.u32 [#allocation4], 4
      %s212 = int_to_ptr.vmem [resolvable:$true] %s211
      %s213 = sshll.u32 %s5, 4
      %s214 = int_to_ptr.hbm [resolvable:$true] %s213
      %216 = dma.vmem_to_hbm [thread:$0]  %s212, 128, %s214, [#allocation5]
    $region25: #{tpu_custom_call.1} parent=1 // pred_fallthru
      _
    // Predicated region
    $region26: #{tpu_custom_call.1} parent=1 // pred_check
      _
    $region27: #{tpu_custom_call.1} parent=1 // pred_check_branch
      %218 = sbr.rel (0) target = $region29
    $region28: #{tpu_custom_call.1} parent=1 // pred_region
      %220 = dma.done [#allocation5], 128
    $region29: #{tpu_custom_call.1} parent=1 // pred_fallthru
      _
    %221 = vsyncpa [#allocation5], 1

</llo_original>
